<compile_context>
chip_gen: v5e
topology: v5e:2x2
jax: 0.10.0
libtpu: 0.0.40
codegen_flags: <defaults>
</compile_context>

<pallas_src>
import functools

import jax
import jax.numpy as jnp
from jax import lax
from jax.experimental import pallas as pl
from jax.experimental.pallas import tpu as pltpu


def _cdiv(a, b):
    return -(-a // b)


def _round_up(x, m):
    return _cdiv(x, m) * m


def _instance_memory_kernel(text_ref, feat_ref, mem_pids_ref, pids_ref,
                            pos_ref, all_ref,
                            t_scratch, pos_sum, all_sum,
                            *, inv_temp, n_valid, tiles_per_core, tn,
                            mask_cols):
    c = pl.program_id(0)           # core-split index (parallel)
    j = pl.program_id(1)           # feature-tile index (reduction)

    @pl.when(j == 0)
    def _():
        # Hoisted, loop-invariant work: L2-normalize text rows
        # (F.normalize(dim=1), eps=1e-12) and fold in 1/temp.
        t = text_ref[...].astype(jnp.float32)
        sq = jnp.sum(t * t, axis=1, keepdims=True)
        inv_nrm = lax.rsqrt(jnp.maximum(sq, 1e-24))  # EUP; == 1/max(||t||,1e-12)
        t_scratch[...] = t * (inv_nrm * inv_temp)
        pos_sum[...] = jnp.zeros_like(pos_sum)
        all_sum[...] = jnp.zeros_like(all_sum)

    # scores tile [B, tn]: contract the feature dim of both operands -> no
    # explicit transpose/copy of the [tn, D] feature tile.
    scores = lax.dot_general(
        t_scratch[...], feat_ref[...].astype(jnp.float32),
        dimension_numbers=(((1,), (1,)), ((), ())),
        preferred_element_type=jnp.float32)
    e = jnp.exp(scores)

    if mask_cols:
        # Zero out contributions from zero-padded memory-bank columns.
        col = ((c * tiles_per_core + j) * tn
               + lax.broadcasted_iota(jnp.int32, scores.shape, 1))
        e = jnp.where(col < n_valid, e, 0.0)

    # positives: memory entries whose pid matches the sample's pid.
    labels = pids_ref[...] == mem_pids_ref[...]      # [B,1]==[1,tn] -> [B,tn]
    pos_sum[...] += jnp.sum(jnp.where(labels, e, 0.0), axis=1, keepdims=True)
    all_sum[...] += jnp.sum(e, axis=1, keepdims=True)

    @pl.when(j == pl.num_programs(1) - 1)
    def _():
        pos_ref[...] = pos_sum[...].reshape(pos_ref.shape)
        all_ref[...] = all_sum[...].reshape(all_ref.shape)


def instance_memory_loss(text_inputs, features, mem_pids, pids, temp=0.05,
                         tn=2048, core_split=2):
    """Pallas wrapper: scalar InfoNCE loss (forward of InstanceMemory)."""
    B, D = text_inputs.shape
    N, D2 = features.shape
    assert D == D2

    # Tile sizing: as large as fits the default scoped-VMEM budget (the feature
    # stream is double-buffered: keep a single buffer <= ~8 MiB), clamped so
    # small memory banks don't over-pad; must be a multiple of 128 lanes.
    vmem_cap_rows = max(128, ((2 * 1024 * 1024) // max(D, 1)) // 128 * 128)
    tn_eff = max(128, min(int(tn), vmem_cap_rows, _round_up(N, 128)))
    total_tiles = _cdiv(N, tn_eff)
    # Collapse the megacore split when the bank is too small to feed two cores.
    core_split = max(1, min(int(core_split), total_tiles))
    tiles_per_core = _cdiv(total_tiles, core_split)
    n_pad = core_split * tiles_per_core * tn_eff

    feats = features.astype(jnp.float32)
    mem_row = mem_pids.reshape(1, N).astype(jnp.int32)
    if n_pad != N:
        feats = jnp.pad(feats, ((0, n_pad - N), (0, 0)))
        mem_row = jnp.pad(mem_row, ((0, 0), (0, n_pad - N)))
    pids_col = pids.reshape(B, 1).astype(jnp.int32)

    kernel = functools.partial(
        _instance_memory_kernel,
        inv_temp=1.0 / temp, n_valid=N, tiles_per_core=tiles_per_core,
        tn=tn_eff, mask_cols=(n_pad != N))

    pos_p, all_p = pl.pallas_call(
        kernel,
        out_shape=(jax.ShapeDtypeStruct((core_split, B, 1), jnp.float32),
                   jax.ShapeDtypeStruct((core_split, B, 1), jnp.float32)),
        grid_spec=pltpu.PrefetchScalarGridSpec(
            num_scalar_prefetch=0,
            grid=(core_split, tiles_per_core),
            in_specs=[
                pl.BlockSpec((B, D), lambda c, j: (0, 0)),          # text (resident)
                pl.BlockSpec((tn_eff, D),                           # feature tile
                             lambda c, j: (c * tiles_per_core + j, 0)),
                pl.BlockSpec((1, tn_eff),                           # memory pids tile
                             lambda c, j: (0, c * tiles_per_core + j)),
                pl.BlockSpec((B, 1), lambda c, j: (0, 0)),          # batch pids
            ],
            out_specs=(
                pl.BlockSpec((1, B, 1), lambda c, j: (c, 0, 0)),    # per-core pos sum
                pl.BlockSpec((1, B, 1), lambda c, j: (c, 0, 0)),    # per-core all sum
            ),
            scratch_shapes=[
                pltpu.VMEM((B, D), jnp.float32),   # hoisted normalized/scaled text
                pltpu.VMEM((B, 1), jnp.float32),   # pos_exp_sum accumulator
                pltpu.VMEM((B, 1), jnp.float32),   # all_exp_sum accumulator
            ],
        ),
        compiler_params=pltpu.CompilerParams(
            dimension_semantics=("parallel", "arbitrary")),
    )(text_inputs.astype(jnp.float32), feats, mem_row, pids_col)

    pos = jnp.sum(pos_p, axis=0)[:, 0]     # [B]
    alls = jnp.sum(all_p, axis=0)[:, 0]    # [B]
    return jnp.mean(-jnp.log(pos / alls + 1e-8))


class InstanceMemoryJAX:
    """JAX/Pallas counterpart of the PyTorch InstanceMemory module (forward only)."""

    def __init__(self, num_features, num_instances, temp=0.05, momentum=0.2,
                 margin=0.2, key=None):
        self.num_features = num_features
        self.num_instances = num_instances
        self.temp = temp
        self.momentum = momentum
        self.margin = margin
        # The PyTorch module registers an all-zero memory bank; use deterministic
        # L2-normalized random rows so the kernel computes something meaningful.
        if key is None:
            key = jax.random.PRNGKey(0)
        feats = jax.random.normal(key, (num_instances, num_features), jnp.float32)
        feats = feats / jnp.maximum(
            jnp.linalg.norm(feats, axis=1, keepdims=True), 1e-12)
        self.features = feats
        self.pids = jnp.zeros((num_instances,), jnp.int32)

    def forward(self, image_inputs, text_inputs, image_ids, pids):
        # state update glue:  self.pids[img_id] = pid
        self.pids = self.pids.at[image_ids].set(pids.astype(jnp.int32))
        # image_inputs normalization only feeds the backward memory update.
        del image_inputs
        return instance_memory_loss(text_inputs, self.features, self.pids,
                                    pids, temp=self.temp)


def _reference_loss(text, features, mem_pids, pids, temp):
    t = text / jnp.maximum(jnp.linalg.norm(text, axis=1, keepdims=True), 1e-12)
    scores = (t @ features.T) / temp
    labels = (pids[:, None] == mem_pids[None, :]).astype(jnp.float32)
    e = jnp.exp(scores)
    pos = (e * labels).sum(1)
    allsum = e.sum(1)
    return (-jnp.log(pos / allsum + 1e-8)).mean()


if __name__ == "__main__":
    key = jax.random.PRNGKey(0)
    k_feat, k_img, k_txt = jax.random.split(key, 3)

    B, D, N = 8, 32, 128  # batch, num_features, num_instances

    mem = InstanceMemoryJAX(num_features=D, num_instances=N, temp=0.05, key=k_feat)

    image_inputs = jax.random.normal(k_img, (B, D), jnp.float32)
    text_inputs = jax.random.normal(k_txt, (B, D), jnp.float32)
    image_ids = jnp.arange(B, dtype=jnp.int32) * 3 % N
    pids = (jnp.arange(B, dtype=jnp.int32) % 4) + 1

    loss = mem.forward(image_inputs, text_inputs, image_ids, pids)
    loss = jax.block_until_ready(loss)

    ref = _reference_loss(text_inputs, mem.features, mem.pids, pids, mem.temp)
    assert jnp.allclose(loss, ref, rtol=1e-5, atol=1e-5), (loss, ref)

    # Second check at a larger, non-trivially tiled size (exercises padding,
    # column masking and the multi-tile reduction path).
    B2, D2, N2 = 16, 256, 5000
    mem2 = InstanceMemoryJAX(num_features=D2, num_instances=N2, temp=0.05,
                             key=jax.random.PRNGKey(7))
    txt2 = jax.random.normal(jax.random.PRNGKey(8), (B2, D2), jnp.float32)
    img2 = jax.random.normal(jax.random.PRNGKey(9), (B2, D2), jnp.float32)
    ids2 = (jnp.arange(B2, dtype=jnp.int32) * 17) % N2
    pids2 = (jnp.arange(B2, dtype=jnp.int32) % 5) + 1
    loss2 = jax.block_until_ready(mem2.forward(img2, txt2, ids2, pids2))
    ref2 = _reference_loss(txt2, mem2.features, mem2.pids, pids2, mem2.temp)
    assert jnp.allclose(loss2, ref2, rtol=1e-5, atol=1e-5), (loss2, ref2)

    print("KERNEL_OK")
</pallas_src>

<mosaic_0001>
module attributes {stable_mosaic.version = 11 : i64} {
  func.func @_instance_memory_kernel(%arg0: i32, %arg1: i32, %arg2: memref<8x32xf32, #tpu.memory_space<vmem>>, %arg3: memref<128x32xf32, #tpu.memory_space<vmem>>, %arg4: memref<1x128xi32, #tpu.memory_space<vmem>>, %arg5: memref<8x1xi32, #tpu.memory_space<vmem>>, %arg6: memref<1x8x1xf32, #tpu.memory_space<vmem>>, %arg7: memref<1x8x1xf32, #tpu.memory_space<vmem>>, %arg8: memref<8x32xf32, #tpu.memory_space<vmem>>, %arg9: memref<8x1xf32, #tpu.memory_space<vmem>>, %arg10: memref<8x1xf32, #tpu.memory_space<vmem>>) attributes {dimension_semantics = [#tpu.dimension_semantics<parallel>, #tpu.dimension_semantics<arbitrary>], iteration_bounds = array<i64: 1, 1>, scalar_prefetch = 0 : i64, scratch_operands = 3 : i64, tpu.core_type = #tpu.core_type<tc>, window_params = [{pipeline_mode = #tpu.pipeline_mode<synchronous>, transform_indices = @transform_0, window_bounds = array<i64: 8, 32>}, {transform_indices = @transform_1, window_bounds = array<i64: 128, 32>}, {transform_indices = @transform_2, window_bounds = array<i64: 1, 128>}, {pipeline_mode = #tpu.pipeline_mode<synchronous>, transform_indices = @transform_3, window_bounds = array<i64: 8, 1>}, {transform_indices = @transform_4, window_bounds = array<i64: 1, 8, 1>}, {transform_indices = @transform_5, window_bounds = array<i64: 1, 8, 1>}]} {
    %c0_i32 = arith.constant 0 : i32
    %0 = arith.cmpi eq, %arg1, %c0_i32 : i32
    %1 = arith.extui %0 : i1 to i32
    %c0_i32_0 = arith.constant 0 : i32
    %2 = arith.cmpi ne, %1, %c0_i32_0 : i32
    scf.if %2 {
      %c0_21 = arith.constant 0 : index
      %c0_22 = arith.constant 0 : index
      %27 = vector.load %arg2[%c0_21, %c0_22] : memref<8x32xf32, #tpu.memory_space<vmem>>, vector<8x32xf32>
      %28 = arith.mulf %27, %27 : vector<8x32xf32>
      %cst_23 = arith.constant dense<0.000000e+00> : vector<8xf32>
      %29 = vector.multi_reduction <add>, %28, %cst_23 [1] : vector<8x32xf32> to vector<8xf32>
      %30 = vector.shape_cast %29 : vector<8xf32> to vector<8x1xf32>
      %cst_24 = arith.constant 1.000000e-24 : f32
      %31 = vector.broadcast %cst_24 : f32 to vector<8x1xf32>
      %32 = arith.maximumf %30, %31 : vector<8x1xf32>
      %33 = math.rsqrt %32 : vector<8x1xf32>
      %cst_25 = arith.constant 2.000000e+01 : f32
      %34 = vector.broadcast %cst_25 : f32 to vector<8x1xf32>
      %35 = arith.mulf %33, %34 : vector<8x1xf32>
      %36 = vector.broadcast %35 : vector<8x1xf32> to vector<8x32xf32>
      %37 = arith.mulf %27, %36 : vector<8x32xf32>
      %c0_26 = arith.constant 0 : index
      %c0_27 = arith.constant 0 : index
      %38 = vector.load %arg8[%c0_26, %c0_27] : memref<8x32xf32, #tpu.memory_space<vmem>>, vector<8x32xf32>
      tpu.vector_store %arg8[%c0_26, %c0_27], %37 {strides = array<i32>} : memref<8x32xf32, #tpu.memory_space<vmem>>, vector<8x32xf32>,
      %cst_28 = arith.constant 0.000000e+00 : f32
      %39 = vector.broadcast %cst_28 : f32 to vector<8x1xf32>
      %c0_29 = arith.constant 0 : index
      %c0_30 = arith.constant 0 : index
      %40 = vector.load %arg9[%c0_29, %c0_30] : memref<8x1xf32, #tpu.memory_space<vmem>>, vector<8x1xf32>
      tpu.vector_store %arg9[%c0_29, %c0_30], %39 {strides = array<i32>} : memref<8x1xf32, #tpu.memory_space<vmem>>, vector<8x1xf32>,
      %cst_31 = arith.constant 0.000000e+00 : f32
      %41 = vector.broadcast %cst_31 : f32 to vector<8x1xf32>
      %c0_32 = arith.constant 0 : index
      %c0_33 = arith.constant 0 : index
      %42 = vector.load %arg10[%c0_32, %c0_33] : memref<8x1xf32, #tpu.memory_space<vmem>>, vector<8x1xf32>
      tpu.vector_store %arg10[%c0_32, %c0_33], %41 {strides = array<i32>} : memref<8x1xf32, #tpu.memory_space<vmem>>, vector<8x1xf32>,
    } else {
    }
    %c0 = arith.constant 0 : index
    %c0_1 = arith.constant 0 : index
    %3 = vector.load %arg8[%c0, %c0_1] : memref<8x32xf32, #tpu.memory_space<vmem>>, vector<8x32xf32>
    %c0_2 = arith.constant 0 : index
    %c0_3 = arith.constant 0 : index
    %4 = vector.load %arg3[%c0_2, %c0_3] : memref<128x32xf32, #tpu.memory_space<vmem>>, vector<128x32xf32>
    %cst = arith.constant dense<0.000000e+00> : vector<8x128xf32>
    %5 = tpu.matmul %3, %4, %cst {dimension_numbers = #tpu.dot_dimension_numbers<[1], [1], [0], [0], [0, 0, 1, 0], [], []>} : vector<8x32xf32>, vector<128x32xf32>, vector<8x128xf32> -> vector<8x128xf32>
    %6 = math.exp %5 : vector<8x128xf32>
    %c0_4 = arith.constant 0 : index
    %c0_5 = arith.constant 0 : index
    %7 = vector.load %arg5[%c0_4, %c0_5] : memref<8x1xi32, #tpu.memory_space<vmem>>, vector<8x1xi32>
    %c0_6 = arith.constant 0 : index
    %c0_7 = arith.constant 0 : index
    %8 = vector.load %arg4[%c0_6, %c0_7] : memref<1x128xi32, #tpu.memory_space<vmem>>, vector<1x128xi32>
    %9 = vector.broadcast %7 : vector<8x1xi32> to vector<8x128xi32>
    %10 = vector.broadcast %8 : vector<1x128xi32> to vector<8x128xi32>
    %11 = arith.cmpi eq, %9, %10 : vector<8x128xi32>
    %c0_8 = arith.constant 0 : index
    %c0_9 = arith.constant 0 : index
    %12 = vector.load %arg9[%c0_8, %c0_9] : memref<8x1xf32, #tpu.memory_space<vmem>>, vector<8x1xf32>
    %cst_10 = arith.constant 0.000000e+00 : f32
    %13 = vector.broadcast %cst_10 : f32 to vector<8x128xf32>
    %14 = arith.select %11, %6, %13 : vector<8x128xi1>, vector<8x128xf32>
    %cst_11 = arith.constant dense<0.000000e+00> : vector<8xf32>
    %15 = vector.multi_reduction <add>, %14, %cst_11 [1] : vector<8x128xf32> to vector<8xf32>
    %16 = vector.shape_cast %15 : vector<8xf32> to vector<8x1xf32>
    %17 = arith.addf %12, %16 : vector<8x1xf32>
    %c0_12 = arith.constant 0 : index
    %c0_13 = arith.constant 0 : index
    %18 = vector.load %arg9[%c0_12, %c0_13] : memref<8x1xf32, #tpu.memory_space<vmem>>, vector<8x1xf32>
    tpu.vector_store %arg9[%c0_12, %c0_13], %17 {strides = array<i32>} : memref<8x1xf32, #tpu.memory_space<vmem>>, vector<8x1xf32>,
    %c0_14 = arith.constant 0 : index
    %c0_15 = arith.constant 0 : index
    %19 = vector.load %arg10[%c0_14, %c0_15] : memref<8x1xf32, #tpu.memory_space<vmem>>, vector<8x1xf32>
    %cst_16 = arith.constant dense<0.000000e+00> : vector<8xf32>
    %20 = vector.multi_reduction <add>, %6, %cst_16 [1] : vector<8x128xf32> to vector<8xf32>
    %21 = vector.shape_cast %20 : vector<8xf32> to vector<8x1xf32>
    %22 = arith.addf %19, %21 : vector<8x1xf32>
    %c0_17 = arith.constant 0 : index
    %c0_18 = arith.constant 0 : index
    %23 = vector.load %arg10[%c0_17, %c0_18] : memref<8x1xf32, #tpu.memory_space<vmem>>, vector<8x1xf32>
    tpu.vector_store %arg10[%c0_17, %c0_18], %22 {strides = array<i32>} : memref<8x1xf32, #tpu.memory_space<vmem>>, vector<8x1xf32>,
    %c0_i32_19 = arith.constant 0 : i32
    %24 = arith.cmpi eq, %arg1, %c0_i32_19 : i32
    %25 = arith.extui %24 : i1 to i32
    %c0_i32_20 = arith.constant 0 : i32
    %26 = arith.cmpi ne, %25, %c0_i32_20 : i32
    scf.if %26 {
      %c0_21 = arith.constant 0 : index
      %c0_22 = arith.constant 0 : index
      %27 = vector.load %arg9[%c0_21, %c0_22] : memref<8x1xf32, #tpu.memory_space<vmem>>, vector<8x1xf32>
      %28 = vector.shape_cast %27 : vector<8x1xf32> to vector<1x8x1xf32>
      %c0_23 = arith.constant 0 : index
      %c0_24 = arith.constant 0 : index
      %c0_25 = arith.constant 0 : index
      %29 = vector.load %arg6[%c0_23, %c0_24, %c0_25] : memref<1x8x1xf32, #tpu.memory_space<vmem>>, vector<1x8x1xf32>
      tpu.vector_store %arg6[%c0_23, %c0_24, %c0_25], %28 {strides = array<i32>} : memref<1x8x1xf32, #tpu.memory_space<vmem>>, vector<1x8x1xf32>,
      %c0_26 = arith.constant 0 : index
      %c0_27 = arith.constant 0 : index
      %30 = vector.load %arg10[%c0_26, %c0_27] : memref<8x1xf32, #tpu.memory_space<vmem>>, vector<8x1xf32>
      %31 = vector.shape_cast %30 : vector<8x1xf32> to vector<1x8x1xf32>
      %c0_28 = arith.constant 0 : index
      %c0_29 = arith.constant 0 : index
      %c0_30 = arith.constant 0 : index
      %32 = vector.load %arg7[%c0_28, %c0_29, %c0_30] : memref<1x8x1xf32, #tpu.memory_space<vmem>>, vector<1x8x1xf32>
      tpu.vector_store %arg7[%c0_28, %c0_29, %c0_30], %31 {strides = array<i32>} : memref<1x8x1xf32, #tpu.memory_space<vmem>>, vector<1x8x1xf32>,
    } else {
    }
    return
  }
  func.func @transform_0(%arg0: i32, %arg1: i32) -> (i32, i32) {
    %c0_i32 = arith.constant 0 : i32
    %c0_i32_0 = arith.constant 0 : i32
    %c0_i32_1 = arith.constant 0 : i32
    return %c0_i32, %c0_i32_0 : i32, i32
  }
  func.func @transform_1(%arg0: i32, %arg1: i32) -> (i32, i32) {
    %c1_i32 = arith.constant 1 : i32
    %0 = arith.muli %arg0, %c1_i32 : i32
    %1 = arith.addi %0, %arg1 : i32
    %c0_i32 = arith.constant 0 : i32
    %c0_i32_0 = arith.constant 0 : i32
    return %1, %c0_i32 : i32, i32
  }
  func.func @transform_2(%arg0: i32, %arg1: i32) -> (i32, i32) {
    %c1_i32 = arith.constant 1 : i32
    %0 = arith.muli %arg0, %c1_i32 : i32
    %1 = arith.addi %0, %arg1 : i32
    %c0_i32 = arith.constant 0 : i32
    %c0_i32_0 = arith.constant 0 : i32
    return %c0_i32, %1 : i32, i32
  }
  func.func @transform_3(%arg0: i32, %arg1: i32) -> (i32, i32) {
    %c0_i32 = arith.constant 0 : i32
    %c0_i32_0 = arith.constant 0 : i32
    %c0_i32_1 = arith.constant 0 : i32
    return %c0_i32, %c0_i32_0 : i32, i32
  }
  func.func @transform_4(%arg0: i32, %arg1: i32) -> (i32, i32, i32) {
    %c0_i32 = arith.constant 0 : i32
    %c0_i32_0 = arith.constant 0 : i32
    %c0_i32_1 = arith.constant 0 : i32
    return %arg0, %c0_i32, %c0_i32_0 : i32, i32, i32
  }
  func.func @transform_5(%arg0: i32, %arg1: i32) -> (i32, i32, i32) {
    %c0_i32 = arith.constant 0 : i32
    %c0_i32_0 = arith.constant 0 : i32
    %c0_i32_1 = arith.constant 0 : i32
    return %arg0, %c0_i32, %c0_i32_0 : i32, i32, i32
  }
}

</mosaic_0001>

<llo_original>
// kernel: tpu_custom_call.1
$region0: #{tpu_custom_call.1}
  #allocation0 [shape = 'u32[]', space=smem, size = 0x4, offset = 0x4, fixed_abs, tag = 'smem constant byte address 0x4 - core index']
  #allocation1 [shape = 'u32[72,128]{1,0:T(1,128)}', space=vmem, size = 0x9000, scoped, tag = 'internal scratch']
  #allocation2 [shape = 'f32[8,32]{1,0:T(8,128)}', space=vmem, size = 0x1000, scoped, tag = 'scratch operand']
  #allocation3 [shape = 'f32[8,1]{1,0:T(8,128)}', space=vmem, size = 0x1000, scoped, tag = 'scratch operand']
  #allocation4 [shape = 'f32[8,1]{1,0:T(8,128)}', space=vmem, size = 0x1000, scoped, tag = 'scratch operand']
  %s0 = inlined_call_operand.vmem [shape: f32[8,32], index: 0, kind: input, shape index: {}]
  %s1 = inlined_call_operand.vmem [shape: f32[128,32], index: 1, kind: input, shape index: {}]
  %s2 = inlined_call_operand.vmem [shape: s32[1,128], index: 2, kind: input, shape index: {}]
  %s3 = inlined_call_operand.vmem [shape: s32[8,1], index: 3, kind: input, shape index: {}]
  %s4 = inlined_call_operand.vmem [shape: f32[1,8,1], index: 4, kind: output, shape index: {0}]
  %s5 = inlined_call_operand.vmem [shape: f32[1,8,1], index: 5, kind: output, shape index: {1}]
  %6 = xla_tuple %s4, %s5
  %s7 = sld [smem:[#allocation0]]
  $region42: #{tpu_custom_call.1} parent=0
    _
  %s9 = ssub.s32 1, %s7
  %s10 = scalar_select 0, %s9, %s7
  // Predicated region
  $region2: #{tpu_custom_call.1} parent=0 // pred_check
    _
  $region3: #{tpu_custom_call.1} parent=0 // pred_check_branch
    %12 = sbr.rel (0) target = $region5
  $region4: #{tpu_custom_call.1} parent=0 // pred_region
    _
  $region5: #{tpu_custom_call.1} parent=0 // pred_fallthru
    _
  // Predicated region
  $region6: #{tpu_custom_call.1} parent=0 // pred_check
    _
  $region7: #{tpu_custom_call.1} parent=0 // pred_check_branch
    %14 = sbr.rel (0) target = $region9
  $region8: #{tpu_custom_call.1} parent=0 // pred_region
    %s15 = sadd.s32 0, 0
    %s16 = smul.u32 16, %s15
    %p17 = scmp.lt.s32.totalorder %s16, 15
    %s18 = scalar_select %p17, %s16, 15
    %s19 = smul.addr %s18, 8
    %s20 = scalar_lea.vmem %s1, %s19
    %s21 = sadd.s32 0, 0
    %s22 = smul.u32 16, %s21
  $region9: #{tpu_custom_call.1} parent=0 // pred_fallthru
    _
  // Predicated region
  $region10: #{tpu_custom_call.1} parent=0 // pred_check
    _
  $region11: #{tpu_custom_call.1} parent=0 // pred_check_branch
    %24 = sbr.rel (0) target = $region13
  $region12: #{tpu_custom_call.1} parent=0 // pred_region
    %s25 = sadd.s32 0, 0
    %p26 = scmp.lt.s32.totalorder %s25, 0
    %s27 = scalar_select %p26, %s25, 0
    %s28 = scalar_lea.vmem %s2, %s27
    %s29 = sadd.s32 0, 0
  $region13: #{tpu_custom_call.1} parent=0 // pred_fallthru
    _
  // Predicated region
  $region14: #{tpu_custom_call.1} parent=0 // pred_check
    _
  $region15: #{tpu_custom_call.1} parent=0 // pred_check_branch
    %31 = sbr.rel (0) target = $region17
  $region16: #{tpu_custom_call.1} parent=0 // pred_region
    _
  $region17: #{tpu_custom_call.1} parent=0 // pred_fallthru
    _
  %s32 = sadd.s32 0, 0
  %s33 = smul.u32 16, %s32
  %p34 = scmp.lt.s32.totalorder %s33, 15
  %s35 = scalar_select %p34, %s33, 15
  %s36 = smul.addr %s35, 8
  %s37 = scalar_lea.vmem %s1, %s36
  %s38 = sadd.s32 0, 0
  %p39 = scmp.lt.s32.totalorder %s38, 0
  %s40 = scalar_select %p39, %s38, 0
  %s41 = scalar_lea.vmem %s2, %s40
  %s42 = sadd.s32 0, 0
  %s43 = smul.u32 16, %s42
  %p44 = scmp.lt.s32.totalorder %s43, 15
  %s45 = scalar_select %p44, %s43, 15
  %s46 = smul.addr %s45, 8
  %s47 = scalar_lea.vmem %s1, %s46
  %s48 = sadd.s32 0, 0
  %s49 = smul.u32 16, %s48
  %s50 = sadd.s32 0, 0
  %p51 = scmp.lt.s32.totalorder %s50, 0
  %s52 = scalar_select %p51, %s50, 0
  %s53 = scalar_lea.vmem %s2, %s52
  %s54 = sadd.s32 0, 0
  %p55 = scmp.eq.s32.totalorder 0, 0
  // Predicated region
  $region18: #{tpu_custom_call.1} parent=0 // pred_check
    %p56 = pneg %p55
  $region19: #{tpu_custom_call.1} parent=0 // pred_check_branch
    %58 = sbr.rel (%p56) target = $region21
  $region20: #{tpu_custom_call.1} parent=0 // pred_region
    %v59 = vld [vmem:[%s0] sm:$0xff]
    %v60 = vmul.f32 %v59, %v59
    %vm61 = vcmask 261120
    %v62 = vsel %vm61, %v60, 0.0
    %63 = vadd.xlane.f32.xlu0 %v62
    %v64 = vpop.xlane.xlu0 %63
    %v65 = vmax.f32 %v64, 1e-24
    %v66 = vrsqrt.pop %v65
    %v67 = vmul.f32 %v66, %v65
    %v68 = vmul.f32 %v67, %v66
    %v69 = vmul.f32 0.5, %v68
    %v70 = vsub.f32 1.5, %v69
    %v71 = vmul.f32 %v66, %v70
    %vm72 = vweird.f32 %v65
    %vm73 = vweird.f32 %v66
    %vm74 = vmor %vm72, %vm73
    %v75 = vsel %vm74, %v66, %v71
    %v76 = vmul.f32 %v75, 20.0
    %v77 = vmul.f32 %v59, %v76
    %78 = vst.msk [vmem:[#allocation2] sm:$0xff] %vm61, %v77
    %vm79 = vcmask 7168
    %80 = vst.msk [vmem:[#allocation3] sm:$0xff] %vm79, 0.0
    %81 = vst.msk [vmem:[#allocation4] sm:$0xff] %vm79, 0.0
  $region21: #{tpu_custom_call.1} parent=0 // pred_fallthru
    _
  %v82 = vld [vmem:[#allocation2] sm:$0xff]
  %v83 = vld [vmem:[%s47] sm:$0xff]
  %v84 = vld [vmem:[%s47 + $0x8] sm:$0xff]
  %v85 = vld [vmem:[%s47 + $0x10] sm:$0xff]
  %v86 = vld [vmem:[%s47 + $0x18] sm:$0xff]
  %v87 = vld [vmem:[%s47 + $0x20] sm:$0xff]
  %v88 = vld [vmem:[%s47 + $0x28] sm:$0xff]
  %v89 = vld [vmem:[%s47 + $0x30] sm:$0xff]
  %v90 = vld [vmem:[%s47 + $0x38] sm:$0xff]
  %v91 = vld [vmem:[%s47 + $0x40] sm:$0xff]
  %v92 = vld [vmem:[%s47 + $0x48] sm:$0xff]
  %v93 = vld [vmem:[%s47 + $0x50] sm:$0xff]
  %v94 = vld [vmem:[%s47 + $0x58] sm:$0xff]
  %v95 = vld [vmem:[%s47 + $0x60] sm:$0xff]
  %v96 = vld [vmem:[%s47 + $0x68] sm:$0xff]
  %v97 = vld [vmem:[%s47 + $0x70] sm:$0xff]
  %v98 = vld [vmem:[%s47 + $0x78] sm:$0xff]
  %vm99 = vcmask 261120
  %v101 = vsel %vm99, %v82, 0
  %v104 = vsel %vm99, %v83, 0
  %v107 = vsel %vm99, %v84, 0
  %v110 = vsel %vm99, %v85, 0
  %v113 = vsel %vm99, %v86, 0
  %v116 = vsel %vm99, %v87, 0
  %v119 = vsel %vm99, %v88, 0
  %v122 = vsel %vm99, %v89, 0
  %v125 = vsel %vm99, %v90, 0
  %v128 = vsel %vm99, %v91, 0
  %v131 = vsel %vm99, %v92, 0
  %v134 = vsel %vm99, %v93, 0
  %v137 = vsel %vm99, %v94, 0
  %v140 = vsel %vm99, %v95, 0
  %v143 = vsel %vm99, %v96, 0
  %v146 = vsel %vm99, %v97, 0
  %v149 = vsel %vm99, %v98, 0
  %151 = vmatpush.xpose.msra.mxu0 %v149
  %152 = vmatpush.xpose.msra.mxu0 %v146
  %153 = vmatpush.xpose.msra.mxu0 %v143
  %154 = vmatpush.xpose.msra.mxu0 %v140
  %155 = vmatpush.xpose.msra.mxu0 %v137
  %156 = vmatpush.xpose.msra.mxu0 %v134
  %157 = vmatpush.xpose.msra.mxu0 %v131
  %158 = vmatpush.xpose.msra.mxu0 %v128
  %159 = vmatpush.xpose.msra.mxu0 %v125
  %160 = vmatpush.xpose.msra.mxu0 %v122
  %161 = vmatpush.xpose.msra.mxu0 %v119
  %162 = vmatpush.xpose.msra.mxu0 %v116
  %163 = vmatpush.xpose.msra.mxu0 %v113
  %164 = vmatpush.xpose.msra.mxu0 %v110
  %165 = vmatpush.xpose.msra.mxu0 %v107
  %166 = vmatpush.xpose.msra.mxu0 %v104
  %167 = vmatmul.f32.gmra.mxu0 %v101
  %v168 = vpop.f32.mrf.mxu0
  %v169 = vadd.f32 0.0, %v168
  %170 = vdwg.mxu0
  %v171 = vmul.f32 %v169, 1.442695
  %v172 = vpow.pop %v171
  %v173 = vld [vmem:[%s3] sm:$0xff]
  %v174 = vld [vmem:[%s53] sm:$0x1]
  %175 = vset.pattern.permute.xlu0 0
  %176 = vperm.xlu0 %175, %v173
  %v177 = vpop.permute.xlu0 %176
  %v178 = vperm.slane %v174, 0
  %vm179 = vcmp.eq.s32.totalorder %v177, %v178
  %v180 = vld [vmem:[#allocation3] sm:$0xff]
  %v181 = vsel %vm179, %v172, 0.0
  %182 = vadd.xlane.f32.xlu0 %v181
  %v183 = vpop.xlane.xlu0 %182
  %v184 = vadd.f32 %v180, %v183
  %vm185 = vcmask 7168
  %186 = vst.msk [vmem:[#allocation3] sm:$0xff] %vm185, %v184
  %v187 = vld [vmem:[#allocation4] sm:$0xff]
  %188 = vadd.xlane.f32.xlu0 %v172
  %v189 = vpop.xlane.xlu0 %188
  %v190 = vadd.f32 %v187, %v189
  %191 = vst.msk [vmem:[#allocation4] sm:$0xff] %vm185, %v190
  // Predicated region
  $region22: #{tpu_custom_call.1} parent=0 // pred_check
    %p192 = pneg %p55
  $region23: #{tpu_custom_call.1} parent=0 // pred_check_branch
    %194 = sbr.rel (%p192) target = $region25
  $region24: #{tpu_custom_call.1} parent=0 // pred_region
    %v195 = vld [vmem:[#allocation3] sm:$0xff]
    %196 = vst.msk [vmem:[%s4] sm:$0xff] %vm185, %v195
    %v197 = vld [vmem:[#allocation4] sm:$0xff]
    %198 = vst.msk [vmem:[%s5] sm:$0xff] %vm185, %v197
  $region25: #{tpu_custom_call.1} parent=0 // pred_fallthru
    _
  // Predicated region
  $region26: #{tpu_custom_call.1} parent=0 // pred_check
    _
  $region27: #{tpu_custom_call.1} parent=0 // pred_check_branch
    %200 = sbr.rel (0) target = $region29
  $region28: #{tpu_custom_call.1} parent=0 // pred_region
    _
  $region29: #{tpu_custom_call.1} parent=0 // pred_fallthru
    _
  // Predicated region
  $region30: #{tpu_custom_call.1} parent=0 // pred_check
    _
  $region31: #{tpu_custom_call.1} parent=0 // pred_check_branch
    %202 = sbr.rel (0) target = $region33
  $region32: #{tpu_custom_call.1} parent=0 // pred_region
    _
  $region33: #{tpu_custom_call.1} parent=0 // pred_fallthru
    _
  // Predicated region
  $region34: #{tpu_custom_call.1} parent=0 // pred_check
    _
  $region35: #{tpu_custom_call.1} parent=0 // pred_check_branch
    %204 = sbr.rel (0) target = $region37
  $region36: #{tpu_custom_call.1} parent=0 // pred_region
    _
  $region37: #{tpu_custom_call.1} parent=0 // pred_fallthru
    _
  // Predicated region
  $region38: #{tpu_custom_call.1} parent=0 // pred_check
    _
  $region39: #{tpu_custom_call.1} parent=0 // pred_check_branch
    %206 = sbr.rel (0) target = $region41
  $region40: #{tpu_custom_call.1} parent=0 // pred_region
    _
  $region41: #{tpu_custom_call.1} parent=0 // pred_fallthru
    _

</llo_original>
